<compile_context>
chip_gen: v7x
topology: tpu7x:2x2x1
jax: 0.10.0
libtpu: 0.0.40
codegen_flags: <defaults>
</compile_context>

<pallas_src>
import math
from functools import partial

import jax
import jax.numpy as jnp
from jax.experimental import pallas as pl
from jax.experimental.pallas import tpu as pltpu


# ----------------------------------------------------------------------------
# Pallas kernels
# ----------------------------------------------------------------------------
def _deconv_stats_kernel(x_ref, w_ref, y_ref, st_ref):
    """Fused deconv matmul (bf16 in, f32 accumulate) + BN-statistics epilogue.

    x_ref : (tm, Ci)      bf16 pixel rows
    w_ref : (Ci, 4*Co)    bf16 weight matrix, columns ordered (kh, kw, co)
    y_ref : (tm, 4*Co)    f32 raw deconv output (un-shuffled layout)
    st_ref: (1, 2, 4*Co)  f32 per-tile [sum; sum of squares] per column
    """
    y = jnp.dot(x_ref[...], w_ref[...], preferred_element_type=jnp.float32)
    y_ref[...] = y
    st_ref[0, 0:1, :] = jnp.sum(y, axis=0, keepdims=True)
    st_ref[0, 1:2, :] = jnp.sum(y * y, axis=0, keepdims=True)


def _bn_relu_kernel(y_ref, sc_ref, sh_ref, o_ref):
    """Elementwise BatchNorm affine (precomputed scale/shift) fused with ReLU."""
    o_ref[...] = jnp.maximum(y_ref[...] * sc_ref[...] + sh_ref[...], 0.0)


# ----------------------------------------------------------------------------
# Tiling helper
# ----------------------------------------------------------------------------
def _pick_row_tile(m, row_bytes, target_rows=256, vmem_budget=4 << 20):
    """Largest divisor of `m` that is sublane-aligned (multiple of 8), at most
    `target_rows`, and keeps a single buffer under `vmem_budget` bytes (Pallas
    double-buffers each tile; the budget leaves ample headroom even for v7x's
    64 MiB VMEM).  Falls back to the full extent (always legal: block dim equals
    the array dim) when no aligned divisor exists."""
    cap = max(8, min(m, target_rows, max(8, vmem_budget // max(row_bytes, 1))))
    for d in range(cap, 0, -1):
        if m % d == 0 and (d % 8 == 0 or d == m):
            return d
    return m


# ----------------------------------------------------------------------------
# _TransitionUp forward (pool='conv')
# ----------------------------------------------------------------------------
def transition_up_forward(params, x, skip, *, drop_rate=0.0, training=True,
                          eps=1e-5, dropout_rng=None):
    # TODO(synk): only the pool='conv' branch (DECONV -> BN -> ReLU) is
    # implemented; the nearest-neighbour-upsample branches are not.
    w = params["deconv_w"]                      # (Ci, Co, 2, 2) torch layout
    gamma = params["bn_g"]
    beta = params["bn_b"]
    B, Ci, H, W = x.shape
    Co = w.shape[1]

    if drop_rate > 0.0 and training:
        # TODO(synk): dropout is plain-JAX glue (not a Pallas kernel).
        key = dropout_rng if dropout_rng is not None else jax.random.PRNGKey(0)
        keep = jax.random.bernoulli(key, 1.0 - drop_rate, x.shape)
        x = jnp.where(keep, x / (1.0 - drop_rate), jnp.zeros_like(x))

    # ---- layout: NCHW -> (B*H*W, Ci) pixel rows, bf16 for the MXU (halves the
    # A/B DMA bytes; accumulation and the epilogue stay in f32).
    M = B * H * W
    N = 4 * Co
    x2 = jnp.transpose(x, (0, 2, 3, 1)).reshape(M, Ci).astype(jnp.bfloat16)
    # Weight matrix with columns ordered (kh, kw, co):
    #   out[b, co, 2h+kh, 2w+kw] = sum_ci x[b, ci, h, w] * w[ci, co, kh, kw]
    wmat = jnp.transpose(w, (0, 2, 3, 1)).reshape(Ci, N).astype(jnp.bfloat16)

    tm = _pick_row_tile(M, row_bytes=Ci * 2 + 2 * N * 4)
    nt = M // tm

    # Kernel 1: deconv matmul + per-tile BN stats (no separate full-read BN pass).
    # K (=Ci) and N (=4*Co) are kept as single resident blocks: they are small
    # for this module; only the M (pixel) axis needs tiling/pipelining.
    y_raw, stats = pl.pallas_call(
        _deconv_stats_kernel,
        out_shape=(jax.ShapeDtypeStruct((M, N), jnp.float32),
                   jax.ShapeDtypeStruct((nt, 2, N), jnp.float32)),
        grid=(nt,),
        in_specs=[pl.BlockSpec((tm, Ci), lambda i: (i, 0)),
                  pl.BlockSpec((Ci, N), lambda i: (0, 0))],
        out_specs=(pl.BlockSpec((tm, N), lambda i: (i, 0)),
                   pl.BlockSpec((1, 2, N), lambda i: (i, 0, 0))),
        compiler_params=pltpu.CompilerParams(
            dimension_semantics=("parallel",)),
    )(x2, wmat)

    # ---- finalize BN statistics (tiny (nt, 2, 4*Co) -> (Co,) reduction).
    col_sum = jnp.sum(stats[:, 0, :], axis=0).reshape(2, 2, Co).sum(axis=(0, 1))
    col_sq = jnp.sum(stats[:, 1, :], axis=0).reshape(2, 2, Co).sum(axis=(0, 1))
    n_el = jnp.float32(4 * M)                      # B * 2H * 2W elements / channel
    mean = col_sum / n_el
    var = jnp.maximum(col_sq / n_el - mean * mean, 0.0)   # biased var (torch train)
    inv = jax.lax.rsqrt(var + eps)
    scale = gamma * inv
    shift = beta - mean * scale
    # Broadcast per-channel scale/shift to the (kh, kw, co) column layout.
    scale_cols = jnp.tile(scale, 4).reshape(1, N).astype(jnp.float32)
    shift_cols = jnp.tile(shift, 4).reshape(1, N).astype(jnp.float32)

    # Kernel 2: tiled elementwise BN-apply + ReLU (lane-dense, pipelined).
    tr = _pick_row_tile(M, row_bytes=2 * N * 4)
    y_act = pl.pallas_call(
        _bn_relu_kernel,
        out_shape=jax.ShapeDtypeStruct((M, N), jnp.float32),
        grid=(M // tr,),
        in_specs=[pl.BlockSpec((tr, N), lambda i: (i, 0)),
                  pl.BlockSpec((1, N), lambda i: (0, 0)),
                  pl.BlockSpec((1, N), lambda i: (0, 0))],
        out_specs=pl.BlockSpec((tr, N), lambda i: (i, 0)),
        compiler_params=pltpu.CompilerParams(
            dimension_semantics=("parallel",)),
    )(y_raw, scale_cols, shift_cols)

    # ---- pixel shuffle + NCHW: the (kh, kw) sub-pixel scatter is folded into
    # the single NHWC->NCHW layout pass the public API needs anyway (fused by
    # XLA with the concat), so it costs no extra HBM round trip.
    up = y_act.reshape(B, H, W, 2, 2, Co).transpose(0, 5, 1, 3, 2, 4)
    up = up.reshape(B, Co, 2 * H, 2 * W)
    return jnp.concatenate([up, skip], axis=1)


# ----------------------------------------------------------------------------
# Parameters (fresh torch module: BN weight=1, bias=0)
# ----------------------------------------------------------------------------
def init_params(key, c_in, c_out):
    w = jax.random.normal(key, (c_in, c_out, 2, 2), jnp.float32) \
        * math.sqrt(2.0 / (4 * c_out))
    return dict(deconv_w=w,
                bn_g=jnp.ones((c_out,), jnp.float32),
                bn_b=jnp.zeros((c_out,), jnp.float32))


# ----------------------------------------------------------------------------
# Pure-JAX reference (for a built-in numeric sanity check)
# ----------------------------------------------------------------------------
def _reference(params, x, skip, eps=1e-5):
    w = params["deconv_w"]
    B, Ci, H, W = x.shape
    Co = w.shape[1]
    y = jnp.einsum("bihw,iokl->bohkwl", x, w).reshape(B, Co, 2 * H, 2 * W)
    mean = y.mean(axis=(0, 2, 3), keepdims=True)
    var = y.var(axis=(0, 2, 3), keepdims=True)
    g = params["bn_g"].reshape(1, Co, 1, 1)
    b = params["bn_b"].reshape(1, Co, 1, 1)
    y = jnp.maximum((y - mean) * jax.lax.rsqrt(var + eps) * g + b, 0.0)
    return jnp.concatenate([y, skip], axis=1)


# ----------------------------------------------------------------------------
if __name__ == "__main__":
    key = jax.random.PRNGKey(0)
    kp, kx, ks = jax.random.split(key, 3)

    B, Ci, H, W = 2, 32, 16, 16          # input feature map
    Co, Cs = 16, 16                      # deconv out channels / skip channels
    params = init_params(kp, Ci, Co)
    x = jax.random.normal(kx, (B, Ci, H, W), jnp.float32)
    skip = jax.random.normal(ks, (B, Cs, 2 * H, 2 * W), jnp.float32)

    fwd = jax.jit(partial(transition_up_forward, drop_rate=0.0))
    out = jax.block_until_ready(fwd(params, x, skip))

    assert out.shape == (B, Co + Cs, 2 * H, 2 * W), out.shape
    assert bool(jnp.all(jnp.isfinite(out)))
    # Skip channels must pass through untouched; up channels are post-ReLU >= 0.
    assert bool(jnp.allclose(out[:, Co:], skip))
    assert bool(jnp.all(out[:, :Co] >= 0.0))
    # Numeric check against the f32 pure-JAX reference (bf16 MXU tolerance).
    ref = _reference(params, x, skip)
    max_err = float(jnp.max(jnp.abs(out - ref)))
    assert max_err < 5e-2, max_err
    print("KERNEL_OK")
</pallas_src>

<mosaic_0001>
module attributes {stable_mosaic.version = 11 : i64} {
  func.func @_deconv_stats_kernel(%arg0: i32, %arg1: memref<256x32xbf16, #tpu.memory_space<vmem>>, %arg2: memref<32x64xbf16, #tpu.memory_space<vmem>>, %arg3: memref<256x64xf32, #tpu.memory_space<vmem>>, %arg4: memref<1x2x64xf32, #tpu.memory_space<vmem>>) attributes {dimension_semantics = [#tpu.dimension_semantics<parallel>], iteration_bounds = array<i64: 2>, scalar_prefetch = 0 : i64, scratch_operands = 0 : i64, tpu.core_type = #tpu.core_type<tc>, window_params = [{transform_indices = @transform_0, window_bounds = array<i64: 256, 32>}, {pipeline_mode = #tpu.pipeline_mode<synchronous>, transform_indices = @transform_1, window_bounds = array<i64: 32, 64>}, {transform_indices = @transform_2, window_bounds = array<i64: 256, 64>}, {transform_indices = @transform_3, window_bounds = array<i64: 1, 2, 64>}]} {
    %c0 = arith.constant 0 : index
    %c0_0 = arith.constant 0 : index
    %0 = vector.load %arg1[%c0, %c0_0] : memref<256x32xbf16, #tpu.memory_space<vmem>>, vector<256x32xbf16>
    %c0_1 = arith.constant 0 : index
    %c0_2 = arith.constant 0 : index
    %1 = vector.load %arg2[%c0_1, %c0_2] : memref<32x64xbf16, #tpu.memory_space<vmem>>, vector<32x64xbf16>
    %cst = arith.constant dense<0.000000e+00> : vector<256x64xf32>
    %2 = tpu.matmul %0, %1, %cst {dimension_numbers = #tpu.dot_dimension_numbers<[1], [0], [0], [1], [0, 0, 1, 1], [], []>} : vector<256x32xbf16>, vector<32x64xbf16>, vector<256x64xf32> -> vector<256x64xf32>
    %c0_3 = arith.constant 0 : index
    %c0_4 = arith.constant 0 : index
    %3 = vector.load %arg3[%c0_3, %c0_4] : memref<256x64xf32, #tpu.memory_space<vmem>>, vector<256x64xf32>
    tpu.vector_store %arg3[%c0_3, %c0_4], %2 {strides = array<i32>} : memref<256x64xf32, #tpu.memory_space<vmem>>, vector<256x64xf32>,
    %cst_5 = arith.constant dense<0.000000e+00> : vector<64xf32>
    %4 = vector.multi_reduction <add>, %2, %cst_5 [0] : vector<256x64xf32> to vector<64xf32>
    %5 = vector.shape_cast %4 : vector<64xf32> to vector<1x64xf32>
    %c0_6 = arith.constant 0 : index
    %c0_7 = arith.constant 0 : index
    %c0_8 = arith.constant 0 : index
    %6 = vector.load %arg4[%c0_6, %c0_7, %c0_8] : memref<1x2x64xf32, #tpu.memory_space<vmem>>, vector<1x1x64xf32>
    %7 = vector.shape_cast %6 : vector<1x1x64xf32> to vector<1x64xf32>
    %8 = vector.shape_cast %5 : vector<1x64xf32> to vector<1x1x64xf32>
    tpu.vector_store %arg4[%c0_6, %c0_7, %c0_8], %8 {strides = array<i32>} : memref<1x2x64xf32, #tpu.memory_space<vmem>>, vector<1x1x64xf32>,
    %9 = arith.mulf %2, %2 : vector<256x64xf32>
    %cst_9 = arith.constant dense<0.000000e+00> : vector<64xf32>
    %10 = vector.multi_reduction <add>, %9, %cst_9 [0] : vector<256x64xf32> to vector<64xf32>
    %11 = vector.shape_cast %10 : vector<64xf32> to vector<1x64xf32>
    %c0_10 = arith.constant 0 : index
    %c1 = arith.constant 1 : index
    %c0_11 = arith.constant 0 : index
    %12 = vector.load %arg4[%c0_10, %c1, %c0_11] : memref<1x2x64xf32, #tpu.memory_space<vmem>>, vector<1x1x64xf32>
    %13 = vector.shape_cast %12 : vector<1x1x64xf32> to vector<1x64xf32>
    %14 = vector.shape_cast %11 : vector<1x64xf32> to vector<1x1x64xf32>
    tpu.vector_store %arg4[%c0_10, %c1, %c0_11], %14 {strides = array<i32>} : memref<1x2x64xf32, #tpu.memory_space<vmem>>, vector<1x1x64xf32>,
    return
  }
  func.func @transform_0(%arg0: i32) -> (i32, i32) {
    %c0_i32 = arith.constant 0 : i32
    %c0_i32_0 = arith.constant 0 : i32
    return %arg0, %c0_i32 : i32, i32
  }
  func.func @transform_1(%arg0: i32) -> (i32, i32) {
    %c0_i32 = arith.constant 0 : i32
    %c0_i32_0 = arith.constant 0 : i32
    %c0_i32_1 = arith.constant 0 : i32
    return %c0_i32, %c0_i32_0 : i32, i32
  }
  func.func @transform_2(%arg0: i32) -> (i32, i32) {
    %c0_i32 = arith.constant 0 : i32
    %c0_i32_0 = arith.constant 0 : i32
    return %arg0, %c0_i32 : i32, i32
  }
  func.func @transform_3(%arg0: i32) -> (i32, i32, i32) {
    %c0_i32 = arith.constant 0 : i32
    %c0_i32_0 = arith.constant 0 : i32
    %c0_i32_1 = arith.constant 0 : i32
    return %arg0, %c0_i32, %c0_i32_0 : i32, i32, i32
  }
}

module attributes {stable_mosaic.version = 11 : i64} {
  func.func @_bn_relu_kernel(%arg0: i32, %arg1: memref<256x64xf32, #tpu.memory_space<vmem>>, %arg2: memref<1x64xf32, #tpu.memory_space<vmem>>, %arg3: memref<1x64xf32, #tpu.memory_space<vmem>>, %arg4: memref<256x64xf32, #tpu.memory_space<vmem>>) attributes {dimension_semantics = [#tpu.dimension_semantics<parallel>], iteration_bounds = array<i64: 2>, scalar_prefetch = 0 : i64, scratch_operands = 0 : i64, tpu.core_type = #tpu.core_type<tc>, window_params = [{transform_indices = @transform_0, window_bounds = array<i64: 256, 64>}, {pipeline_mode = #tpu.pipeline_mode<synchronous>, transform_indices = @transform_1, window_bounds = array<i64: 1, 64>}, {pipeline_mode = #tpu.pipeline_mode<synchronous>, transform_indices = @transform_2, window_bounds = array<i64: 1, 64>}, {transform_indices = @transform_3, window_bounds = array<i64: 256, 64>}]} {
    %c0 = arith.constant 0 : index
    %c0_0 = arith.constant 0 : index
    %0 = vector.load %arg1[%c0, %c0_0] : memref<256x64xf32, #tpu.memory_space<vmem>>, vector<256x64xf32>
    %c0_1 = arith.constant 0 : index
    %c0_2 = arith.constant 0 : index
    %1 = vector.load %arg2[%c0_1, %c0_2] : memref<1x64xf32, #tpu.memory_space<vmem>>, vector<1x64xf32>
    %2 = vector.broadcast %1 : vector<1x64xf32> to vector<256x64xf32>
    %3 = arith.mulf %0, %2 : vector<256x64xf32>
    %c0_3 = arith.constant 0 : index
    %c0_4 = arith.constant 0 : index
    %4 = vector.load %arg3[%c0_3, %c0_4] : memref<1x64xf32, #tpu.memory_space<vmem>>, vector<1x64xf32>
    %5 = vector.broadcast %4 : vector<1x64xf32> to vector<256x64xf32>
    %6 = arith.addf %3, %5 : vector<256x64xf32>
    %cst = arith.constant 0.000000e+00 : f32
    %7 = vector.broadcast %cst : f32 to vector<256x64xf32>
    %8 = arith.maximumf %6, %7 : vector<256x64xf32>
    %c0_5 = arith.constant 0 : index
    %c0_6 = arith.constant 0 : index
    %9 = vector.load %arg4[%c0_5, %c0_6] : memref<256x64xf32, #tpu.memory_space<vmem>>, vector<256x64xf32>
    tpu.vector_store %arg4[%c0_5, %c0_6], %8 {strides = array<i32>} : memref<256x64xf32, #tpu.memory_space<vmem>>, vector<256x64xf32>,
    return
  }
  func.func @transform_0(%arg0: i32) -> (i32, i32) {
    %c0_i32 = arith.constant 0 : i32
    %c0_i32_0 = arith.constant 0 : i32
    return %arg0, %c0_i32 : i32, i32
  }
  func.func @transform_1(%arg0: i32) -> (i32, i32) {
    %c0_i32 = arith.constant 0 : i32
    %c0_i32_0 = arith.constant 0 : i32
    %c0_i32_1 = arith.constant 0 : i32
    return %c0_i32, %c0_i32_0 : i32, i32
  }
  func.func @transform_2(%arg0: i32) -> (i32, i32) {
    %c0_i32 = arith.constant 0 : i32
    %c0_i32_0 = arith.constant 0 : i32
    %c0_i32_1 = arith.constant 0 : i32
    return %c0_i32, %c0_i32_0 : i32, i32
  }
  func.func @transform_3(%arg0: i32) -> (i32, i32) {
    %c0_i32 = arith.constant 0 : i32
    %c0_i32_0 = arith.constant 0 : i32
    return %arg0, %c0_i32 : i32, i32
  }
}

</mosaic_0001>

<llo_original>
// kernel: tile.18
$region0: #{tile.18}
  #allocation0 [shape = 's32[1]{0}', space=sflag, size = 0x4, scoped, tag = 'scoped memory for tile.18']
  %s0 = inlined_call_operand.vmem [shape: f32[16], index: 0, kind: input, shape index: {}]
  %s1 = inlined_call_operand.vmem [shape: f32[4,16], index: 1, kind: output, shape index: {}]
  // Predicated region
  $region2: #{tile.18} parent=0 // pred_check
    _
  $region3: #{tile.18} parent=0 // pred_check_branch
    %3 = sbr.rel (0) target = $region5
  $region4: #{tile.18} parent=0 // pred_region
    _
  $region5: #{tile.18} parent=0 // pred_fallthru
    _
  %v4 = vld [vmem:[%s0] ss:$0 sm:$0xff]
  %5 = vst [vmem:[%s1] sm:$0xf] %v4

// kernel: tile.19
$region0: #{tile.19}
  %s0 = inlined_call_operand.vmem [shape: f32[4,16], index: 0, kind: input, shape index: {}]
  %s1 = inlined_call_operand.vmem [shape: f32[1,64], index: 1, kind: output, shape index: {}]
  $region1: #{tile.19} parent=0
    #allocation0 [shape = 'u8[4096]{0}', space=vmem, size = 0x1000, scoped, tag = 'scoped mem for output reshape']
    #allocation1 [shape = 'u8[4096]{0}', space=vmem, size = 0x1000, scoped, tag = 'scoped mem for input reshape']
    %s3 = sshllo.u32 0, 4
    %v4 = vld [vmem:[%s0] sm:%s3]
    %5 = vst [vmem:[#allocation1] sm:%s3] %v4
    %v6 = vld [vmem:[#allocation1] sm:$0x1]
    %vm7 = vcmask 130048
    %8 = vst.msk [vmem:[#allocation0] sm:$0x1] %vm7, %v6
    %s9 = scalar_lea.vmem [#allocation1], 3
    %v10 = vld [vmem:[%s9] sm:$0x1]
    %11 = vrot.lane.b32.xlu0 %v10, 48
    %v12 = vpop.permute.xlu0 %11
    %vm13 = vcmask 523648
    %14 = vst.msk [vmem:[#allocation0] sm:$0x1] %vm13, %v12
    %s15 = scalar_lea.vmem [#allocation1], 2
    %v16 = vld [vmem:[%s15] sm:$0x1]
    %17 = vrot.lane.b32.xlu0 %v16, 32
    %v18 = vpop.permute.xlu0 %17
    %vm19 = vcmask 392448
    %20 = vst.msk [vmem:[#allocation0] sm:$0x1] %vm19, %v18
    %s21 = scalar_lea.vmem [#allocation1], 1
    %v22 = vld [vmem:[%s21] sm:$0x1]
    %23 = vrot.lane.b32.xlu0 %v22, 16
    %v24 = vpop.permute.xlu0 %23
    %vm25 = vcmask 261248
    %26 = vst.msk [vmem:[#allocation0] sm:$0x1] %vm25, %v24
    %s28 = sshllo.u32 0, 1
    %v30 = vld [vmem:[#allocation0] sm:%s28]
    %s31 = sshllo.u32 0, 1
    %32 = vst [vmem:[%s1] sm:%s31] %v30

// kernel: transition_up_forward.3
$region0: #{transition_up_forward.3}
  #allocation0 [shape = 'u32[]', space=smem, size = 0x4, offset = 0x4, fixed_abs, tag = 'smem constant byte address 0x4 - core index']
  #allocation1 [shape = 'u32[144,128]{1,0:T(1,128)}', space=vmem, size = 0x12000, scoped, tag = 'internal scratch']
  %s0 = inlined_call_operand.vmem [shape: f32[512,64], index: 0, kind: input, shape index: {}]
  %s1 = inlined_call_operand.vmem [shape: f32[1,64], index: 1, kind: input, shape index: {}]
  %s2 = inlined_call_operand.vmem [shape: f32[1,64], index: 2, kind: input, shape index: {}]
  %s3 = inlined_call_operand.vmem [shape: f32[512,64], index: 3, kind: output, shape index: {}]
  %s4 = sld [smem:[#allocation0]]
  $region45: #{transition_up_forward.3} parent=0
    _
  %s6 = ssub.s32 1, %s4
  %s7 = scalar_select 0, %s6, %s4
  loop: start=0, step=1, limit=4
  $region2: #{transition_up_forward.3} parent=0 // loop_pre_header
    _
  $region3: #{transition_up_forward.3} parent=0 // loop_header
    %s9 = sphi 0, %s13
    %p10 = scmp.ge.s32.totalorder %s9, 4
    %s19 = sphi 0, %s21
    %s22 = sphi 0, %s19
    %s23 = sphi 0, %s22
    %s39 = sphi 0, %s23
    %s43 = sphi 0, %s43
    %s45 = sphi 0, %s43
    %s46 = sphi 0, %s45
    %s60 = sphi 0, %s46
    %s64 = sphi 0, %s64
    %s66 = sphi 0, %s64
    %s67 = sphi 0, %s66
    %s81 = sphi 0, %s67
    %s87 = sphi 0, %s89
    %s90 = sphi 0, %s87
    %s91 = sphi 0, %s90
    %s107 = sphi 0, %s91
  $region4: #{transition_up_forward.3} parent=0 // loop_header_branch
    %12 = sbr.rel (%p10) target = $region8
  $region5: #{transition_up_forward.3} parent=0 // loop_body
    %s14 = ssub.s32 %s9, 1
    %s15 = ssub.s32 %s9, 2
    %s16 = sadd.s32 %s9, 1
    %s17 = ssub.s32 %s9, %s16
    %p18 = scmp.eq.s32.totalorder %s17, 0
    %s20 = sadd.s32 %s19, 1
    %s21 = scalar_select %p18, %s19, %s20
    %p24 = pneg %p18
    %p25 = scmp.eq.s32.totalorder %s9, 1
    %p26 = por %p24, %p25
    %p27 = scmp.ne.s32.totalorder %s19, %s22
    %p28 = scmp.eq.s32.totalorder %s9, 0
    %p29 = por %p27, %p28
    %p30 = scmp.ne.s32.totalorder %s19, %s22
    %p31 = scmp.eq.s32.totalorder %s14, 1
    %p32 = por %p30, %p31
    %p33 = scmp.ne.s32.totalorder %s22, %s23
    %p34 = scmp.eq.s32.totalorder %s14, 0
    %p35 = por %p33, %p34
    %p36 = scmp.ne.s32.totalorder %s22, %s23
    %p37 = scmp.eq.s32.totalorder %s15, 1
    %p38 = por %p36, %p37
    %p40 = scmp.ne.s32.totalorder %s23, %s39
    %p41 = scmp.eq.s32.totalorder %s15, 0
    %p42 = por %p40, %p41
    %s44 = sadd.s32 %s43, 1
    %p47 = scmp.eq.s32.totalorder %s9, 1
    %p48 = scmp.ne.s32.totalorder %s43, %s45
    %p49 = scmp.eq.s32.totalorder %s9, 0
    %p50 = por %p48, %p49
    %p51 = scmp.ne.s32.totalorder %s43, %s45
    %p52 = scmp.eq.s32.totalorder %s14, 1
    %p53 = por %p51, %p52
    %p54 = scmp.ne.s32.totalorder %s45, %s46
    %p55 = scmp.eq.s32.totalorder %s14, 0
    %p56 = por %p54, %p55
    %p57 = scmp.ne.s32.totalorder %s45, %s46
    %p58 = scmp.eq.s32.totalorder %s15, 1
    %p59 = por %p57, %p58
    %p61 = scmp.ne.s32.totalorder %s46, %s60
    %p62 = scmp.eq.s32.totalorder %s15, 0
    %p63 = por %p61, %p62
    %s65 = sadd.s32 %s64, 1
    %p68 = scmp.eq.s32.totalorder %s9, 1
    %p69 = scmp.ne.s32.totalorder %s64, %s66
    %p70 = scmp.eq.s32.totalorder %s9, 0
    %p71 = por %p69, %p70
    %p72 = scmp.ne.s32.totalorder %s64, %s66
    %p73 = scmp.eq.s32.totalorder %s14, 1
    %p74 = por %p72, %p73
    %p75 = scmp.ne.s32.totalorder %s66, %s67
    %p76 = scmp.eq.s32.totalorder %s14, 0
    %p77 = por %p75, %p76
    %p78 = scmp.ne.s32.totalorder %s66, %s67
    %p79 = scmp.eq.s32.totalorder %s15, 1
    %p80 = por %p78, %p79
    %p82 = scmp.ne.s32.totalorder %s67, %s81
    %p83 = scmp.eq.s32.totalorder %s15, 0
    %p84 = por %p82, %p83
    %s85 = ssub.s32 %s9, %s16
    %p86 = scmp.eq.s32.totalorder %s85, 0
    %s88 = sadd.s32 %s87, 1
    %s89 = scalar_select %p86, %s87, %s88
    %p92 = pneg %p86
    %p93 = scmp.eq.s32.totalorder %s9, 1
    %p94 = por %p92, %p93
    %p95 = scmp.ne.s32.totalorder %s87, %s90
    %p96 = scmp.eq.s32.totalorder %s9, 0
    %p97 = por %p95, %p96
    %p98 = scmp.ne.s32.totalorder %s87, %s90
    %p99 = scmp.eq.s32.totalorder %s14, 1
    %p100 = por %p98, %p99
    %p101 = scmp.ne.s32.totalorder %s90, %s91
    %p102 = scmp.eq.s32.totalorder %s14, 0
    %p103 = por %p101, %p102
    %p104 = scmp.ne.s32.totalorder %s90, %s91
    %p105 = scmp.eq.s32.totalorder %s15, 1
    %p106 = por %p104, %p105
    %p108 = scmp.ne.s32.totalorder %s91, %s107
    %p109 = scmp.eq.s32.totalorder %s15, 0
    %p110 = por %p108, %p109
    %p111 = scmp.le.s32.totalorder 1, %s9
    %p112 = scmp.lt.s32.totalorder %s9, 3
    %p113 = pnand %p111, %p112
    %p114 = pneg %p113
    // Predicated region
    $region9: #{transition_up_forward.3} parent=5 // pred_check
      _
    $region10: #{transition_up_forward.3} parent=5 // pred_check_branch
      %116 = sbr.rel (%p113) target = $region12
    $region11: #{transition_up_forward.3} parent=5 // pred_region
      %s117 = ssub.s32 %s9, 1
      // Predicated region
      $region13: #{transition_up_forward.3} parent=11 // pred_check
        %p118 = pneg %p56
      $region14: #{transition_up_forward.3} parent=11 // pred_check_branch
        %120 = sbr.rel (%p118) target = $region16
      $region15: #{transition_up_forward.3} parent=11 // pred_region
        _
      $region16: #{transition_up_forward.3} parent=11 // pred_fallthru
        _
      // Predicated region
      $region17: #{transition_up_forward.3} parent=11 // pred_check
        %p121 = pneg %p77
      $region18: #{transition_up_forward.3} parent=11 // pred_check_branch
        %123 = sbr.rel (%p121) target = $region20
      $region19: #{transition_up_forward.3} parent=11 // pred_region
        _
      $region20: #{transition_up_forward.3} parent=11 // pred_fallthru
        _
    $region12: #{transition_up_forward.3} parent=5 // pred_fallthru
      _
    %p124 = scmp.lt.s32.totalorder %s9, 2
    // Predicated region
    $region21: #{transition_up_forward.3} parent=5 // pred_check
      %p125 = pneg %p124
    $region22: #{transition_up_forward.3} parent=5 // pred_check_branch
      %127 = sbr.rel (%p125) target = $region24
    $region23: #{transition_up_forward.3} parent=5 // pred_region
      // Predicated region
      $region25: #{transition_up_forward.3} parent=23 // pred_check
        %p128 = pneg %p29
      $region26: #{transition_up_forward.3} parent=23 // pred_check_branch
        %130 = sbr.rel (%p128) target = $region28
      $region27: #{transition_up_forward.3} parent=23 // pred_region
        %s131 = smul.u32 32, %s9
        %p132 = scmp.lt.s32.totalorder %s131, 63
        %s133 = scalar_select %p132, %s131, 63
        %s134 = smul.addr %s133, 8
        %s135 = scalar_lea.vmem %s0, %s134
        %s136 = smul.u32 32, %s9
      $region28: #{transition_up_forward.3} parent=23 // pred_fallthru
        _
    $region24: #{transition_up_forward.3} parent=5 // pred_fallthru
      _
    %p137 = scmp.le.s32.totalorder 1, %s9
    %p138 = scmp.lt.s32.totalorder %s9, 3
    %p139 = pnand %p137, %p138
    %p140 = pneg %p139
    // Predicated region
    $region29: #{transition_up_forward.3} parent=5 // pred_check
      _
    $region30: #{transition_up_forward.3} parent=5 // pred_check_branch
      %142 = sbr.rel (%p139) target = $region32
    $region31: #{transition_up_forward.3} parent=5 // pred_region
      %s143 = ssub.s32 %s9, 1
      %s144 = smul.u32 32, %s14
      %p145 = scmp.lt.s32.totalorder %s144, 63
      %s146 = scalar_select %p145, %s144, 63
      %s147 = smul.addr %s146, 8
      %s148 = scalar_lea.vmem %s0, %s147
      %p149 = pneg %p35
      %p150 = pneg %p32
      %p151 = pneg %p56
      %p152 = pneg %p53
      %p153 = pneg %p77
      %p154 = pneg %p74
      %p155 = pneg %p103
      %p156 = pneg %p100
      %s157 = smul.u32 32, %s14
      %p158 = scmp.lt.s32.totalorder %s157, 63
      %s159 = scalar_select %p158, %s157, 63
      %s160 = smul.addr %s159, 8
      %s161 = scalar_lea.vmem %s3, %s160
      %s162 = smul.u32 32, %s14
      %p163 = scmp.lt.s32.totalorder %s162, 63
      %s164 = scalar_select %p163, %s162, 63
      %s165 = smul.addr %s164, 8
      %s166 = scalar_lea.vmem %s0, %s165
      %s167 = smul.u32 32, %s14
      %s168 = smul.u32 32, %s14
      %p169 = scmp.lt.s32.totalorder %s168, 63
      %s170 = scalar_select %p169, %s168, 63
      %s171 = smul.addr %s170, 8
      %s172 = scalar_lea.vmem %s3, %s171
      %s173 = smul.u32 32, %s14
      %v174 = vld [vmem:[%s166] sm:$0xff]
      %v175 = vld [vmem:[%s166 + $0x8] sm:$0xff]
      %v176 = vld [vmem:[%s166 + $0x10] sm:$0xff]
      %v177 = vld [vmem:[%s166 + $0x18] sm:$0xff]
      %v178 = vld [vmem:[%s166 + $0x20] sm:$0xff]
      %v179 = vld [vmem:[%s166 + $0x28] sm:$0xff]
      %v180 = vld [vmem:[%s166 + $0x30] sm:$0xff]
      %v181 = vld [vmem:[%s166 + $0x38] sm:$0xff]
      %v182 = vld [vmem:[%s166 + $0x40] sm:$0xff]
      %v183 = vld [vmem:[%s166 + $0x48] sm:$0xff]
      %v184 = vld [vmem:[%s166 + $0x50] sm:$0xff]
      %v185 = vld [vmem:[%s166 + $0x58] sm:$0xff]
      %v186 = vld [vmem:[%s166 + $0x60] sm:$0xff]
      %v187 = vld [vmem:[%s166 + $0x68] sm:$0xff]
      %v188 = vld [vmem:[%s166 + $0x70] sm:$0xff]
      %v189 = vld [vmem:[%s166 + $0x78] sm:$0xff]
      %v190 = vld [vmem:[%s166 + $0x80] sm:$0xff]
      %v191 = vld [vmem:[%s166 + $0x88] sm:$0xff]
      %v192 = vld [vmem:[%s166 + $0x90] sm:$0xff]
      %v193 = vld [vmem:[%s166 + $0x98] sm:$0xff]
      %v194 = vld [vmem:[%s166 + $0xa0] sm:$0xff]
      %v195 = vld [vmem:[%s166 + $0xa8] sm:$0xff]
      %v196 = vld [vmem:[%s166 + $0xb0] sm:$0xff]
      %v197 = vld [vmem:[%s166 + $0xb8] sm:$0xff]
      %v198 = vld [vmem:[%s166 + $0xc0] sm:$0xff]
      %v199 = vld [vmem:[%s166 + $0xc8] sm:$0xff]
      %v200 = vld [vmem:[%s166 + $0xd0] sm:$0xff]
      %v201 = vld [vmem:[%s166 + $0xd8] sm:$0xff]
      %v202 = vld [vmem:[%s166 + $0xe0] sm:$0xff]
      %v203 = vld [vmem:[%s166 + $0xe8] sm:$0xff]
      %v204 = vld [vmem:[%s166 + $0xf0] sm:$0xff]
      %v205 = vld [vmem:[%s166 + $0xf8] sm:$0xff]
      %v206 = vld [vmem:[%s1] sm:$0x1]
      %v208 = vlaneseq
      %v209 = vshrl.u32 %v208, 7
      %v210 = vsub.s32 0, %v209
      %v211 = vrot.slane %v206, %v210
      %v213 = vmul.f32 %v174, %v211
      %v214 = vmul.f32 %v175, %v211
      %v215 = vmul.f32 %v176, %v211
      %v216 = vmul.f32 %v177, %v211
      %v217 = vmul.f32 %v178, %v211
      %v218 = vmul.f32 %v179, %v211
      %v219 = vmul.f32 %v180, %v211
      %v220 = vmul.f32 %v181, %v211
      %v221 = vmul.f32 %v182, %v211
      %v222 = vmul.f32 %v183, %v211
      %v223 = vmul.f32 %v184, %v211
      %v224 = vmul.f32 %v185, %v211
      %v225 = vmul.f32 %v186, %v211
      %v226 = vmul.f32 %v187, %v211
      %v227 = vmul.f32 %v188, %v211
      %v228 = vmul.f32 %v189, %v211
      %v229 = vmul.f32 %v190, %v211
      %v230 = vmul.f32 %v191, %v211
      %v231 = vmul.f32 %v192, %v211
      %v232 = vmul.f32 %v193, %v211
      %v233 = vmul.f32 %v194, %v211
      %v234 = vmul.f32 %v195, %v211
      %v235 = vmul.f32 %v196, %v211
      %v236 = vmul.f32 %v197, %v211
      %v237 = vmul.f32 %v198, %v211
      %v238 = vmul.f32 %v199, %v211
      %v239 = vmul.f32 %v200, %v211
      %v240 = vmul.f32 %v201, %v211
      %v241 = vmul.f32 %v202, %v211
      %v242 = vmul.f32 %v203, %v211
      %v243 = vmul.f32 %v204, %v211
      %v244 = vmul.f32 %v205, %v211
      %v245 = vld [vmem:[%s2] sm:$0x1]
      %v247 = vlaneseq
      %v248 = vshrl.u32 %v247, 7
      %v249 = vsub.s32 0, %v248
      %v250 = vrot.slane %v245, %v249
      %v252 = vadd.f32 %v213, %v250
      %v253 = vadd.f32 %v214, %v250
      %v254 = vadd.f32 %v215, %v250
      %v255 = vadd.f32 %v216, %v250
      %v256 = vadd.f32 %v217, %v250
      %v257 = vadd.f32 %v218, %v250
      %v258 = vadd.f32 %v219, %v250
      %v259 = vadd.f32 %v220, %v250
      %v260 = vadd.f32 %v221, %v250
      %v261 = vadd.f32 %v222, %v250
      %v262 = vadd.f32 %v223, %v250
      %v263 = vadd.f32 %v224, %v250
      %v264 = vadd.f32 %v225, %v250
      %v265 = vadd.f32 %v226, %v250
      %v266 = vadd.f32 %v227, %v250
      %v267 = vadd.f32 %v228, %v250
      %v268 = vadd.f32 %v229, %v250
      %v269 = vadd.f32 %v230, %v250
      %v270 = vadd.f32 %v231, %v250
      %v271 = vadd.f32 %v232, %v250
      %v272 = vadd.f32 %v233, %v250
      %v273 = vadd.f32 %v234, %v250
      %v274 = vadd.f32 %v235, %v250
      %v275 = vadd.f32 %v236, %v250
      %v276 = vadd.f32 %v237, %v250
      %v277 = vadd.f32 %v238, %v250
      %v278 = vadd.f32 %v239, %v250
      %v279 = vadd.f32 %v240, %v250
      %v280 = vadd.f32 %v241, %v250
      %v281 = vadd.f32 %v242, %v250
      %v282 = vadd.f32 %v243, %v250
      %v283 = vadd.f32 %v244, %v250
      %v284 = vmax.f32 %v252, 0.0
      %v285 = vmax.f32 %v253, 0.0
      %v286 = vmax.f32 %v254, 0.0
      %v287 = vmax.f32 %v255, 0.0
      %v288 = vmax.f32 %v256, 0.0
      %v289 = vmax.f32 %v257, 0.0
      %v290 = vmax.f32 %v258, 0.0
      %v291 = vmax.f32 %v259, 0.0
      %v292 = vmax.f32 %v260, 0.0
      %v293 = vmax.f32 %v261, 0.0
      %v294 = vmax.f32 %v262, 0.0
      %v295 = vmax.f32 %v263, 0.0
      %v296 = vmax.f32 %v264, 0.0
      %v297 = vmax.f32 %v265, 0.0
      %v298 = vmax.f32 %v266, 0.0
      %v299 = vmax.f32 %v267, 0.0
      %v300 = vmax.f32 %v268, 0.0
      %v301 = vmax.f32 %v269, 0.0
      %v302 = vmax.f32 %v270, 0.0
      %v303 = vmax.f32 %v271, 0.0
      %v304 = vmax.f32 %v272, 0.0
      %v305 = vmax.f32 %v273, 0.0
      %v306 = vmax.f32 %v274, 0.0
      %v307 = vmax.f32 %v275, 0.0
      %v308 = vmax.f32 %v276, 0.0
      %v309 = vmax.f32 %v277, 0.0
      %v310 = vmax.f32 %v278, 0.0
      %v311 = vmax.f32 %v279, 0.0
      %v312 = vmax.f32 %v280, 0.0
      %v313 = vmax.f32 %v281, 0.0
      %v314 = vmax.f32 %v282, 0.0
      %v315 = vmax.f32 %v283, 0.0
      %vm316 = vcmask 523264
      %317 = vst.msk [vmem:[%s172] sm:$0xff] %vm316, %v284
      %318 = vst.msk [vmem:[%s172 + $0x8] sm:$0xff] %vm316, %v285
      %319 = vst.msk [vmem:[%s172 + $0x10] sm:$0xff] %vm316, %v286
      %320 = vst.msk [vmem:[%s172 + $0x18] sm:$0xff] %vm316, %v287
      %321 = vst.msk [vmem:[%s172 + $0x20] sm:$0xff] %vm316, %v288
      %322 = vst.msk [vmem:[%s172 + $0x28] sm:$0xff] %vm316, %v289
      %323 = vst.msk [vmem:[%s172 + $0x30] sm:$0xff] %vm316, %v290
      %324 = vst.msk [vmem:[%s172 + $0x38] sm:$0xff] %vm316, %v291
      %325 = vst.msk [vmem:[%s172 + $0x40] sm:$0xff] %vm316, %v292
      %326 = vst.msk [vmem:[%s172 + $0x48] sm:$0xff] %vm316, %v293
      %327 = vst.msk [vmem:[%s172 + $0x50] sm:$0xff] %vm316, %v294
      %328 = vst.msk [vmem:[%s172 + $0x58] sm:$0xff] %vm316, %v295
      %329 = vst.msk [vmem:[%s172 + $0x60] sm:$0xff] %vm316, %v296
      %330 = vst.msk [vmem:[%s172 + $0x68] sm:$0xff] %vm316, %v297
      %331 = vst.msk [vmem:[%s172 + $0x70] sm:$0xff] %vm316, %v298
      %332 = vst.msk [vmem:[%s172 + $0x78] sm:$0xff] %vm316, %v299
      %333 = vst.msk [vmem:[%s172 + $0x80] sm:$0xff] %vm316, %v300
      %334 = vst.msk [vmem:[%s172 + $0x88] sm:$0xff] %vm316, %v301
      %335 = vst.msk [vmem:[%s172 + $0x90] sm:$0xff] %vm316, %v302
      %336 = vst.msk [vmem:[%s172 + $0x98] sm:$0xff] %vm316, %v303
      %337 = vst.msk [vmem:[%s172 + $0xa0] sm:$0xff] %vm316, %v304
      %338 = vst.msk [vmem:[%s172 + $0xa8] sm:$0xff] %vm316, %v305
      %339 = vst.msk [vmem:[%s172 + $0xb0] sm:$0xff] %vm316, %v306
      %340 = vst.msk [vmem:[%s172 + $0xb8] sm:$0xff] %vm316, %v307
      %341 = vst.msk [vmem:[%s172 + $0xc0] sm:$0xff] %vm316, %v308
      %342 = vst.msk [vmem:[%s172 + $0xc8] sm:$0xff] %vm316, %v309
      %343 = vst.msk [vmem:[%s172 + $0xd0] sm:$0xff] %vm316, %v310
      %344 = vst.msk [vmem:[%s172 + $0xd8] sm:$0xff] %vm316, %v311
      %345 = vst.msk [vmem:[%s172 + $0xe0] sm:$0xff] %vm316, %v312
      %346 = vst.msk [vmem:[%s172 + $0xe8] sm:$0xff] %vm316, %v313
      %347 = vst.msk [vmem:[%s172 + $0xf0] sm:$0xff] %vm316, %v314
      %348 = vst.msk [vmem:[%s172 + $0xf8] sm:$0xff] %vm316, %v315
      %s349 = smul.u32 32, %s14
      %p350 = scmp.lt.s32.totalorder %s349, 63
      %s351 = scalar_select %p350, %s349, 63
      %s352 = smul.addr %s351, 8
      %s353 = scalar_lea.vmem %s3, %s352
      // Predicated region
      $region33: #{transition_up_forward.3} parent=31 // pred_check
        %p354 = pneg %p100
      $region34: #{transition_up_forward.3} parent=31 // pred_check_branch
        %356 = sbr.rel (%p354) target = $region36
      $region35: #{transition_up_forward.3} parent=31 // pred_region
        %s357 = smul.u32 32, %s14
      $region36: #{transition_up_forward.3} parent=31 // pred_fallthru
        _
    $region32: #{transition_up_forward.3} parent=5 // pred_fallthru
      _
    %p358 = scmp.le.s32.totalorder 2, %s9
    // Predicated region
    $region37: #{transition_up_forward.3} parent=5 // pred_check
      %p359 = pneg %p358
    $region38: #{transition_up_forward.3} parent=5 // pred_check_branch
      %361 = sbr.rel (%p359) target = $region40
    $region39: #{transition_up_forward.3} parent=5 // pred_region
      %s362 = ssub.s32 %s9, 2
      // Predicated region
      $region41: #{transition_up_forward.3} parent=39 // pred_check
        %p363 = pneg %p106
      $region42: #{transition_up_forward.3} parent=39 // pred_check_branch
        %365 = sbr.rel (%p363) target = $region44
      $region43: #{transition_up_forward.3} parent=39 // pred_region
        %s366 = smul.u32 32, %s15
        %p367 = scmp.lt.s32.totalorder %s366, 63
        %s368 = scalar_select %p367, %s366, 63
        %s369 = smul.addr %s368, 8
        %s370 = scalar_lea.vmem %s3, %s369
      $region44: #{transition_up_forward.3} parent=39 // pred_fallthru
        _
    $region40: #{transition_up_forward.3} parent=5 // pred_fallthru
      _
  $region6: #{transition_up_forward.3} parent=0 // loop_footer
    %s13 = sadd.s32 1, %s9
  $region7: #{transition_up_forward.3} parent=0 // loop_footer_branch
    %8 = sbr.rel target = $region3
  $region8: #{transition_up_forward.3} parent=0 // loop_exit
    _

// kernel: transition_up_forward.2
$region0: #{transition_up_forward.2}
  #allocation0 [shape = 'u32[]', space=smem, size = 0x4, offset = 0x4, fixed_abs, tag = 'smem constant byte address 0x4 - core index']
  #allocation1 [shape = 'u32[144,128]{1,0:T(1,128)}', space=vmem, size = 0x12000, scoped, tag = 'internal scratch']
  %s0 = inlined_call_operand.vmem [shape: bf16[512,32], index: 0, kind: input, shape index: {}]
  %s1 = inlined_call_operand.vmem [shape: bf16[32,64], index: 1, kind: input, shape index: {}]
  %s2 = inlined_call_operand.vmem [shape: f32[512,64], index: 2, kind: output, shape index: {0}]
  %s3 = inlined_call_operand.vmem [shape: f32[2,2,64], index: 3, kind: output, shape index: {1}]
  %4 = xla_tuple %s2, %s3
  %s5 = sld [smem:[#allocation0]]
  $region49: #{transition_up_forward.2} parent=0
    _
  %s7 = ssub.s32 1, %s5
  %s8 = scalar_select 0, %s7, %s5
  loop: start=0, step=1, limit=4
  $region2: #{transition_up_forward.2} parent=0 // loop_pre_header
    _
  $region3: #{transition_up_forward.2} parent=0 // loop_header
    %s10 = sphi 0, %s14
    %p11 = scmp.ge.s32.totalorder %s10, 4
    %s20 = sphi 0, %s22
    %s23 = sphi 0, %s20
    %s24 = sphi 0, %s23
    %s40 = sphi 0, %s24
    %s44 = sphi 0, %s44
    %s46 = sphi 0, %s44
    %s47 = sphi 0, %s46
    %s61 = sphi 0, %s47
    %s67 = sphi 0, %s69
    %s70 = sphi 0, %s67
    %s71 = sphi 0, %s70
    %s87 = sphi 0, %s71
    %s93 = sphi 0, %s95
    %s96 = sphi 0, %s93
    %s97 = sphi 0, %s96
    %s113 = sphi 0, %s97
  $region4: #{transition_up_forward.2} parent=0 // loop_header_branch
    %13 = sbr.rel (%p11) target = $region8
  $region5: #{transition_up_forward.2} parent=0 // loop_body
    %s15 = ssub.s32 %s10, 1
    %s16 = ssub.s32 %s10, 2
    %s17 = sadd.s32 %s10, 1
    %s18 = ssub.s32 %s10, %s17
    %p19 = scmp.eq.s32.totalorder %s18, 0
    %s21 = sadd.s32 %s20, 1
    %s22 = scalar_select %p19, %s20, %s21
    %p25 = pneg %p19
    %p26 = scmp.eq.s32.totalorder %s10, 1
    %p27 = por %p25, %p26
    %p28 = scmp.ne.s32.totalorder %s20, %s23
    %p29 = scmp.eq.s32.totalorder %s10, 0
    %p30 = por %p28, %p29
    %p31 = scmp.ne.s32.totalorder %s20, %s23
    %p32 = scmp.eq.s32.totalorder %s15, 1
    %p33 = por %p31, %p32
    %p34 = scmp.ne.s32.totalorder %s23, %s24
    %p35 = scmp.eq.s32.totalorder %s15, 0
    %p36 = por %p34, %p35
    %p37 = scmp.ne.s32.totalorder %s23, %s24
    %p38 = scmp.eq.s32.totalorder %s16, 1
    %p39 = por %p37, %p38
    %p41 = scmp.ne.s32.totalorder %s24, %s40
    %p42 = scmp.eq.s32.totalorder %s16, 0
    %p43 = por %p41, %p42
    %s45 = sadd.s32 %s44, 1
    %p48 = scmp.eq.s32.totalorder %s10, 1
    %p49 = scmp.ne.s32.totalorder %s44, %s46
    %p50 = scmp.eq.s32.totalorder %s10, 0
    %p51 = por %p49, %p50
    %p52 = scmp.ne.s32.totalorder %s44, %s46
    %p53 = scmp.eq.s32.totalorder %s15, 1
    %p54 = por %p52, %p53
    %p55 = scmp.ne.s32.totalorder %s46, %s47
    %p56 = scmp.eq.s32.totalorder %s15, 0
    %p57 = por %p55, %p56
    %p58 = scmp.ne.s32.totalorder %s46, %s47
    %p59 = scmp.eq.s32.totalorder %s16, 1
    %p60 = por %p58, %p59
    %p62 = scmp.ne.s32.totalorder %s47, %s61
    %p63 = scmp.eq.s32.totalorder %s16, 0
    %p64 = por %p62, %p63
    %s65 = ssub.s32 %s10, %s17
    %p66 = scmp.eq.s32.totalorder %s65, 0
    %s68 = sadd.s32 %s67, 1
    %s69 = scalar_select %p66, %s67, %s68
    %p72 = pneg %p66
    %p73 = scmp.eq.s32.totalorder %s10, 1
    %p74 = por %p72, %p73
    %p75 = scmp.ne.s32.totalorder %s67, %s70
    %p76 = scmp.eq.s32.totalorder %s10, 0
    %p77 = por %p75, %p76
    %p78 = scmp.ne.s32.totalorder %s67, %s70
    %p79 = scmp.eq.s32.totalorder %s15, 1
    %p80 = por %p78, %p79
    %p81 = scmp.ne.s32.totalorder %s70, %s71
    %p82 = scmp.eq.s32.totalorder %s15, 0
    %p83 = por %p81, %p82
    %p84 = scmp.ne.s32.totalorder %s70, %s71
    %p85 = scmp.eq.s32.totalorder %s16, 1
    %p86 = por %p84, %p85
    %p88 = scmp.ne.s32.totalorder %s71, %s87
    %p89 = scmp.eq.s32.totalorder %s16, 0
    %p90 = por %p88, %p89
    %s91 = ssub.s32 %s10, %s17
    %p92 = scmp.eq.s32.totalorder %s91, 0
    %s94 = sadd.s32 %s93, 1
    %s95 = scalar_select %p92, %s93, %s94
    %p98 = pneg %p92
    %p99 = scmp.eq.s32.totalorder %s10, 1
    %p100 = por %p98, %p99
    %p101 = scmp.ne.s32.totalorder %s93, %s96
    %p102 = scmp.eq.s32.totalorder %s10, 0
    %p103 = por %p101, %p102
    %p104 = scmp.ne.s32.totalorder %s93, %s96
    %p105 = scmp.eq.s32.totalorder %s15, 1
    %p106 = por %p104, %p105
    %p107 = scmp.ne.s32.totalorder %s96, %s97
    %p108 = scmp.eq.s32.totalorder %s15, 0
    %p109 = por %p107, %p108
    %p110 = scmp.ne.s32.totalorder %s96, %s97
    %p111 = scmp.eq.s32.totalorder %s16, 1
    %p112 = por %p110, %p111
    %p114 = scmp.ne.s32.totalorder %s97, %s113
    %p115 = scmp.eq.s32.totalorder %s16, 0
    %p116 = por %p114, %p115
    %p117 = scmp.le.s32.totalorder 1, %s10
    %p118 = scmp.lt.s32.totalorder %s10, 3
    %p119 = pnand %p117, %p118
    %p120 = pneg %p119
    // Predicated region
    $region9: #{transition_up_forward.2} parent=5 // pred_check
      _
    $region10: #{transition_up_forward.2} parent=5 // pred_check_branch
      %122 = sbr.rel (%p119) target = $region12
    $region11: #{transition_up_forward.2} parent=5 // pred_region
      %s123 = ssub.s32 %s10, 1
      // Predicated region
      $region13: #{transition_up_forward.2} parent=11 // pred_check
        %p124 = pneg %p57
      $region14: #{transition_up_forward.2} parent=11 // pred_check_branch
        %126 = sbr.rel (%p124) target = $region16
      $region15: #{transition_up_forward.2} parent=11 // pred_region
        _
      $region16: #{transition_up_forward.2} parent=11 // pred_fallthru
        _
    $region12: #{transition_up_forward.2} parent=5 // pred_fallthru
      _
    %p127 = scmp.lt.s32.totalorder %s10, 2
    // Predicated region
    $region17: #{transition_up_forward.2} parent=5 // pred_check
      %p128 = pneg %p127
    $region18: #{transition_up_forward.2} parent=5 // pred_check_branch
      %130 = sbr.rel (%p128) target = $region20
    $region19: #{transition_up_forward.2} parent=5 // pred_region
      // Predicated region
      $region21: #{transition_up_forward.2} parent=19 // pred_check
        %p131 = pneg %p30
      $region22: #{transition_up_forward.2} parent=19 // pred_check_branch
        %133 = sbr.rel (%p131) target = $region24
      $region23: #{transition_up_forward.2} parent=19 // pred_region
        %s134 = smul.u32 32, %s10
        %p135 = scmp.lt.s32.totalorder %s134, 63
        %s136 = scalar_select %p135, %s134, 63
        %s137 = smul.addr %s136, 4
        %s138 = scalar_lea.vmem %s0, %s137
        %s139 = smul.u32 32, %s10
      $region24: #{transition_up_forward.2} parent=19 // pred_fallthru
        _
    $region20: #{transition_up_forward.2} parent=5 // pred_fallthru
      _
    %p140 = scmp.le.s32.totalorder 1, %s10
    %p141 = scmp.lt.s32.totalorder %s10, 3
    %p142 = pnand %p140, %p141
    %p143 = pneg %p142
    // Predicated region
    $region25: #{transition_up_forward.2} parent=5 // pred_check
      _
    $region26: #{transition_up_forward.2} parent=5 // pred_check_branch
      %145 = sbr.rel (%p142) target = $region28
    $region27: #{transition_up_forward.2} parent=5 // pred_region
      %s146 = ssub.s32 %s10, 1
      %s147 = smul.u32 32, %s15
      %p148 = scmp.lt.s32.totalorder %s147, 63
      %s149 = scalar_select %p148, %s147, 63
      %s150 = smul.addr %s149, 4
      %s151 = scalar_lea.vmem %s0, %s150
      %p152 = pneg %p36
      %p153 = pneg %p33
      %p154 = pneg %p57
      %p155 = pneg %p54
      %p156 = pneg %p83
      %p157 = pneg %p80
      %s158 = smul.u32 32, %s15
      %p159 = scmp.lt.s32.totalorder %s158, 63
      %s160 = scalar_select %p159, %s158, 63
      %s161 = smul.addr %s160, 8
      %s162 = scalar_lea.vmem %s2, %s161
      %p163 = pneg %p109
      %p164 = pneg %p106
      %p165 = scmp.lt.s32.totalorder %s15, 1
      %s166 = scalar_select %p165, %s15, 1
      %s167 = smul.addr %s166, 2
      %s168 = scalar_lea.vmem %s3, %s167
      %s169 = smul.u32 32, %s15
      %p170 = scmp.lt.s32.totalorder %s169, 63
      %s171 = scalar_select %p170, %s169, 63
      %s172 = smul.addr %s171, 4
      %s173 = scalar_lea.vmem %s0, %s172
      %s174 = smul.u32 32, %s15
      %s175 = smul.u32 32, %s15
      %p176 = scmp.lt.s32.totalorder %s175, 63
      %s177 = scalar_select %p176, %s175, 63
      %s178 = smul.addr %s177, 8
      %s179 = scalar_lea.vmem %s2, %s178
      %s180 = smul.u32 32, %s15
      %p181 = scmp.lt.s32.totalorder %s15, 1
      %s182 = scalar_select %p181, %s15, 1
      %s183 = smul.addr %s182, 2
      %s184 = scalar_lea.vmem %s3, %s183
      %v186 = vld [vmem:[%s173] sm:$0xf]
      %v187 = vld [vmem:[%s173 + $0x4] sm:$0xf]
      %v188 = vld [vmem:[%s173 + $0x8] sm:$0xf]
      %v189 = vld [vmem:[%s173 + $0xc] sm:$0xf]
      %v190 = vld [vmem:[%s173 + $0x10] sm:$0xf]
      %v191 = vld [vmem:[%s173 + $0x14] sm:$0xf]
      %v192 = vld [vmem:[%s173 + $0x18] sm:$0xf]
      %v193 = vld [vmem:[%s173 + $0x1c] sm:$0xf]
      %v194 = vld [vmem:[%s173 + $0x20] sm:$0xf]
      %v195 = vld [vmem:[%s173 + $0x24] sm:$0xf]
      %v196 = vld [vmem:[%s173 + $0x28] sm:$0xf]
      %v197 = vld [vmem:[%s173 + $0x2c] sm:$0xf]
      %v198 = vld [vmem:[%s173 + $0x30] sm:$0xf]
      %v199 = vld [vmem:[%s173 + $0x34] sm:$0xf]
      %v200 = vld [vmem:[%s173 + $0x38] sm:$0xf]
      %v201 = vld [vmem:[%s173 + $0x3c] sm:$0xf]
      %v202 = vld [vmem:[%s173 + $0x40] sm:$0xf]
      %v203 = vld [vmem:[%s173 + $0x44] sm:$0xf]
      %v204 = vld [vmem:[%s173 + $0x48] sm:$0xf]
      %v205 = vld [vmem:[%s173 + $0x4c] sm:$0xf]
      %v206 = vld [vmem:[%s173 + $0x50] sm:$0xf]
      %v207 = vld [vmem:[%s173 + $0x54] sm:$0xf]
      %v208 = vld [vmem:[%s173 + $0x58] sm:$0xf]
      %v209 = vld [vmem:[%s173 + $0x5c] sm:$0xf]
      %v210 = vld [vmem:[%s173 + $0x60] sm:$0xf]
      %v211 = vld [vmem:[%s173 + $0x64] sm:$0xf]
      %v212 = vld [vmem:[%s173 + $0x68] sm:$0xf]
      %v213 = vld [vmem:[%s173 + $0x6c] sm:$0xf]
      %v214 = vld [vmem:[%s173 + $0x70] sm:$0xf]
      %v215 = vld [vmem:[%s173 + $0x74] sm:$0xf]
      %v216 = vld [vmem:[%s173 + $0x78] sm:$0xf]
      %v217 = vld [vmem:[%s173 + $0x7c] sm:$0xf]
      %v218 = vld [vmem:[%s1] sm:$0xf]
      %v219 = vld [vmem:[%s1 + $0x4] sm:$0xf]
      %v220 = vld [vmem:[%s1 + $0x8] sm:$0xf]
      %v221 = vld [vmem:[%s1 + $0xc] sm:$0xf]
      %v254 = vunpack.c.l.b16 %v186
      %v255 = vunpack.c.l.b16 %v187
      %v256 = vunpack.c.l.b16 %v188
      %v257 = vunpack.c.l.b16 %v189
      %v258 = vunpack.c.l.b16 %v190
      %v259 = vunpack.c.l.b16 %v191
      %v260 = vunpack.c.l.b16 %v192
      %v261 = vunpack.c.l.b16 %v193
      %v262 = vunpack.c.l.b16 %v194
      %v263 = vunpack.c.l.b16 %v195
      %v264 = vunpack.c.l.b16 %v196
      %v265 = vunpack.c.l.b16 %v197
      %v266 = vunpack.c.l.b16 %v198
      %v267 = vunpack.c.l.b16 %v199
      %v268 = vunpack.c.l.b16 %v200
      %v269 = vunpack.c.l.b16 %v201
      %v270 = vunpack.c.l.b16 %v202
      %v271 = vunpack.c.l.b16 %v203
      %v272 = vunpack.c.l.b16 %v204
      %v273 = vunpack.c.l.b16 %v205
      %v274 = vunpack.c.l.b16 %v206
      %v275 = vunpack.c.l.b16 %v207
      %v276 = vunpack.c.l.b16 %v208
      %v277 = vunpack.c.l.b16 %v209
      %v278 = vunpack.c.l.b16 %v210
      %v279 = vunpack.c.l.b16 %v211
      %v280 = vunpack.c.l.b16 %v212
      %v281 = vunpack.c.l.b16 %v213
      %v282 = vunpack.c.l.b16 %v214
      %v283 = vunpack.c.l.b16 %v215
      %v284 = vunpack.c.l.b16 %v216
      %v285 = vunpack.c.l.b16 %v217
      %v286 = vpack.c.b16 %v255, %v254
      %v287 = vpack.c.b16 %v257, %v256
      %v288 = vpack.c.b16 %v259, %v258
      %v289 = vpack.c.b16 %v261, %v260
      %v290 = vpack.c.b16 %v263, %v262
      %v291 = vpack.c.b16 %v265, %v264
      %v292 = vpack.c.b16 %v267, %v266
      %v293 = vpack.c.b16 %v269, %v268
      %v294 = vpack.c.b16 %v271, %v270
      %v295 = vpack.c.b16 %v273, %v272
      %v296 = vpack.c.b16 %v275, %v274
      %v297 = vpack.c.b16 %v277, %v276
      %v298 = vpack.c.b16 %v279, %v278
      %v299 = vpack.c.b16 %v281, %v280
      %v300 = vpack.c.b16 %v283, %v282
      %v301 = vpack.c.b16 %v285, %v284
      %v306 = vunpack.c.l.b16 %v218
      %v307 = vunpack.c.l.b16 %v219
      %v308 = vunpack.c.l.b16 %v220
      %v309 = vunpack.c.l.b16 %v221
      %v310 = vpack.c.b16 %v307, %v306
      %v311 = vpack.c.b16 %v309, %v308
      %vm314 = vcmask 261120
      %v316 = vsel %vm314, %v286, 0
      %v319 = vsel %vm314, %v287, 0
      %v322 = vsel %vm314, %v288, 0
      %v325 = vsel %vm314, %v289, 0
      %v328 = vsel %vm314, %v290, 0
      %v331 = vsel %vm314, %v291, 0
      %v334 = vsel %vm314, %v292, 0
      %v337 = vsel %vm314, %v293, 0
      %v340 = vsel %vm314, %v294, 0
      %v343 = vsel %vm314, %v295, 0
      %v346 = vsel %vm314, %v296, 0
      %v349 = vsel %vm314, %v297, 0
      %v352 = vsel %vm314, %v298, 0
      %v355 = vsel %vm314, %v299, 0
      %v358 = vsel %vm314, %v300, 0
      %v361 = vsel %vm314, %v301, 0
      %363 = vmatprep.subr.bf16.mxu0 0
      %364 = vmatpush1.bf16.msra.mxu0 %v310
      %365 = vmatprep.subr.bf16.mxu0 0
      %366 = vmatpush1.bf16.msra.mxu0 %v311
      %367 = vmatprep.subr.bf16.mxu0 0
      %368 = vmatpush1.bf16.msra.mxu0 0
      %369 = vmatprep.subr.bf16.mxu0 0
      %370 = vmatpush1.bf16.msra.mxu0 0
      %371 = vmatprep.subr.bf16.mxu0 0
      %372 = vmatpush1.bf16.msra.mxu0 0
      %373 = vmatprep.subr.bf16.mxu0 0
      %374 = vmatpush1.bf16.msra.mxu0 0
      %375 = vmatprep.subr.bf16.mxu0 0
      %376 = vmatpush1.bf16.msra.mxu0 0
      %377 = vmatprep.subr.bf16.mxu0 0
      %378 = vmatpush1.bf16.msra.mxu0 0
      %379 = vmatprep.subr.bf16.mxu0 0
      %380 = vmatpush1.bf16.msra.mxu0 0
      %381 = vmatprep.subr.bf16.mxu0 0
      %382 = vmatpush1.bf16.msra.mxu0 0
      %383 = vmatprep.subr.bf16.mxu0 0
      %384 = vmatpush1.bf16.msra.mxu0 0
      %385 = vmatprep.subr.bf16.mxu0 0
      %386 = vmatpush1.bf16.msra.mxu0 0
      %387 = vmatprep.subr.bf16.mxu0 0
      %388 = vmatpush1.bf16.msra.mxu0 0
      %389 = vmatprep.subr.bf16.mxu0 0
      %390 = vmatpush1.bf16.msra.mxu0 0
      %391 = vmatprep.subr.bf16.mxu0 0
      %392 = vmatpush1.bf16.msra.mxu0 0
      %393 = vmatprep.subr.bf16.mxu0 0
      %394 = vmatpush1.bf16.msra.mxu0 0
      %395 = vmatprep.mubr.bf16.mxu0 0
      %396 = vmatmul.mubr.bf16.gmra.mrb[0].mxu0 %v316
      %v397 = vpop.f32.mrb[0].mxu0
      %v398 = vadd.f32 0.0, %v397
      %v399 = vpop.f32.mrb[0].mxu0
      %v400 = vpop.f32.mrb[0].mxu0
      %v401 = vadd.f32 0.0, %v400
      %v402 = vpop.f32.mrb[0].mxu0
      %403 = vmatprep.mubr.bf16.mxu0 0
      %404 = vmatmul.mubr.bf16.gmra.mrb[0].mxu0 %v319
      %v405 = vpop.f32.mrb[0].mxu0
      %v406 = vadd.f32 0.0, %v405
      %v407 = vpop.f32.mrb[0].mxu0
      %v408 = vpop.f32.mrb[0].mxu0
      %v409 = vadd.f32 0.0, %v408
      %v410 = vpop.f32.mrb[0].mxu0
      %411 = vmatprep.mubr.bf16.mxu0 0
      %412 = vmatmul.mubr.bf16.gmra.mrb[0].mxu0 %v322
      %v413 = vpop.f32.mrb[0].mxu0
      %v414 = vadd.f32 0.0, %v413
      %v415 = vpop.f32.mrb[0].mxu0
      %v416 = vpop.f32.mrb[0].mxu0
      %v417 = vadd.f32 0.0, %v416
      %v418 = vpop.f32.mrb[0].mxu0
      %419 = vmatprep.mubr.bf16.mxu0 0
      %420 = vmatmul.mubr.bf16.gmra.mrb[0].mxu0 %v325
      %v421 = vpop.f32.mrb[0].mxu0
      %v422 = vadd.f32 0.0, %v421
      %v423 = vpop.f32.mrb[0].mxu0
      %v424 = vpop.f32.mrb[0].mxu0
      %v425 = vadd.f32 0.0, %v424
      %v426 = vpop.f32.mrb[0].mxu0
      %427 = vmatprep.mubr.bf16.mxu0 0
      %428 = vmatmul.mubr.bf16.gmra.mrb[0].mxu0 %v328
      %v429 = vpop.f32.mrb[0].mxu0
      %v430 = vadd.f32 0.0, %v429
      %v431 = vpop.f32.mrb[0].mxu0
      %v432 = vpop.f32.mrb[0].mxu0
      %v433 = vadd.f32 0.0, %v432
      %v434 = vpop.f32.mrb[0].mxu0
      %435 = vmatprep.mubr.bf16.mxu0 0
      %436 = vmatmul.mubr.bf16.gmra.mrb[0].mxu0 %v331
      %v437 = vpop.f32.mrb[0].mxu0
      %v438 = vadd.f32 0.0, %v437
      %v439 = vpop.f32.mrb[0].mxu0
      %v440 = vpop.f32.mrb[0].mxu0
      %v441 = vadd.f32 0.0, %v440
      %v442 = vpop.f32.mrb[0].mxu0
      %443 = vmatprep.mubr.bf16.mxu0 0
      %444 = vmatmul.mubr.bf16.gmra.mrb[0].mxu0 %v334
      %v445 = vpop.f32.mrb[0].mxu0
      %v446 = vadd.f32 0.0, %v445
      %v447 = vpop.f32.mrb[0].mxu0
      %v448 = vpop.f32.mrb[0].mxu0
      %v449 = vadd.f32 0.0, %v448
      %v450 = vpop.f32.mrb[0].mxu0
      %451 = vmatprep.mubr.bf16.mxu0 0
      %452 = vmatmul.mubr.bf16.gmra.mrb[0].mxu0 %v337
      %v453 = vpop.f32.mrb[0].mxu0
      %v454 = vadd.f32 0.0, %v453
      %v455 = vpop.f32.mrb[0].mxu0
      %v456 = vpop.f32.mrb[0].mxu0
      %v457 = vadd.f32 0.0, %v456
      %v458 = vpop.f32.mrb[0].mxu0
      %459 = vmatprep.mubr.bf16.mxu0 0
      %460 = vmatmul.mubr.bf16.gmra.mrb[0].mxu0 %v340
      %v461 = vpop.f32.mrb[0].mxu0
      %v462 = vadd.f32 0.0, %v461
      %v463 = vpop.f32.mrb[0].mxu0
      %v464 = vpop.f32.mrb[0].mxu0
      %v465 = vadd.f32 0.0, %v464
      %v466 = vpop.f32.mrb[0].mxu0
      %467 = vmatprep.mubr.bf16.mxu0 0
      %468 = vmatmul.mubr.bf16.gmra.mrb[0].mxu0 %v343
      %v469 = vpop.f32.mrb[0].mxu0
      %v470 = vadd.f32 0.0, %v469
      %v471 = vpop.f32.mrb[0].mxu0
      %v472 = vpop.f32.mrb[0].mxu0
      %v473 = vadd.f32 0.0, %v472
      %v474 = vpop.f32.mrb[0].mxu0
      %475 = vmatprep.mubr.bf16.mxu0 0
      %476 = vmatmul.mubr.bf16.gmra.mrb[0].mxu0 %v346
      %v477 = vpop.f32.mrb[0].mxu0
      %v478 = vadd.f32 0.0, %v477
      %v479 = vpop.f32.mrb[0].mxu0
      %v480 = vpop.f32.mrb[0].mxu0
      %v481 = vadd.f32 0.0, %v480
      %v482 = vpop.f32.mrb[0].mxu0
      %483 = vmatprep.mubr.bf16.mxu0 0
      %484 = vmatmul.mubr.bf16.gmra.mrb[0].mxu0 %v349
      %v485 = vpop.f32.mrb[0].mxu0
      %v486 = vadd.f32 0.0, %v485
      %v487 = vpop.f32.mrb[0].mxu0
      %v488 = vpop.f32.mrb[0].mxu0
      %v489 = vadd.f32 0.0, %v488
      %v490 = vpop.f32.mrb[0].mxu0
      %491 = vmatprep.mubr.bf16.mxu0 0
      %492 = vmatmul.mubr.bf16.gmra.mrb[0].mxu0 %v352
      %v493 = vpop.f32.mrb[0].mxu0
      %v494 = vadd.f32 0.0, %v493
      %v495 = vpop.f32.mrb[0].mxu0
      %v496 = vpop.f32.mrb[0].mxu0
      %v497 = vadd.f32 0.0, %v496
      %v498 = vpop.f32.mrb[0].mxu0
      %499 = vmatprep.mubr.bf16.mxu0 0
      %500 = vmatmul.mubr.bf16.gmra.mrb[0].mxu0 %v355
      %v501 = vpop.f32.mrb[0].mxu0
      %v502 = vadd.f32 0.0, %v501
      %v503 = vpop.f32.mrb[0].mxu0
      %v504 = vpop.f32.mrb[0].mxu0
      %v505 = vadd.f32 0.0, %v504
      %v506 = vpop.f32.mrb[0].mxu0
      %507 = vmatprep.mubr.bf16.mxu0 0
      %508 = vmatmul.mubr.bf16.gmra.mrb[0].mxu0 %v358
      %v509 = vpop.f32.mrb[0].mxu0
      %v510 = vadd.f32 0.0, %v509
      %v511 = vpop.f32.mrb[0].mxu0
      %v512 = vpop.f32.mrb[0].mxu0
      %v513 = vadd.f32 0.0, %v512
      %v514 = vpop.f32.mrb[0].mxu0
      %515 = vmatprep.mubr.bf16.mxu0 0
      %516 = vmatmul.mubr.bf16.gmra.mrb[0].mxu0 %v361
      %v517 = vpop.f32.mrb[0].mxu0
      %v518 = vadd.f32 0.0, %v517
      %v519 = vpop.f32.mrb[0].mxu0
      %v520 = vpop.f32.mrb[0].mxu0
      %v521 = vadd.f32 0.0, %v520
      %v522 = vpop.f32.mrb[0].mxu0
      %523 = vdwg.mxu0
      %vm524 = vcmask 523264
      %525 = vst.msk [vmem:[%s179] sm:$0xff] %vm524, %v398
      %526 = vst.msk [vmem:[%s179 + $0x8] sm:$0xff] %vm524, %v401
      %527 = vst.msk [vmem:[%s179 + $0x10] sm:$0xff] %vm524, %v406
      %528 = vst.msk [vmem:[%s179 + $0x18] sm:$0xff] %vm524, %v409
      %529 = vst.msk [vmem:[%s179 + $0x20] sm:$0xff] %vm524, %v414
      %530 = vst.msk [vmem:[%s179 + $0x28] sm:$0xff] %vm524, %v417
      %531 = vst.msk [vmem:[%s179 + $0x30] sm:$0xff] %vm524, %v422
      %532 = vst.msk [vmem:[%s179 + $0x38] sm:$0xff] %vm524, %v425
      %533 = vst.msk [vmem:[%s179 + $0x40] sm:$0xff] %vm524, %v430
      %534 = vst.msk [vmem:[%s179 + $0x48] sm:$0xff] %vm524, %v433
      %535 = vst.msk [vmem:[%s179 + $0x50] sm:$0xff] %vm524, %v438
      %536 = vst.msk [vmem:[%s179 + $0x58] sm:$0xff] %vm524, %v441
      %537 = vst.msk [vmem:[%s179 + $0x60] sm:$0xff] %vm524, %v446
      %538 = vst.msk [vmem:[%s179 + $0x68] sm:$0xff] %vm524, %v449
      %539 = vst.msk [vmem:[%s179 + $0x70] sm:$0xff] %vm524, %v454
      %540 = vst.msk [vmem:[%s179 + $0x78] sm:$0xff] %vm524, %v457
      %541 = vst.msk [vmem:[%s179 + $0x80] sm:$0xff] %vm524, %v462
      %542 = vst.msk [vmem:[%s179 + $0x88] sm:$0xff] %vm524, %v465
      %543 = vst.msk [vmem:[%s179 + $0x90] sm:$0xff] %vm524, %v470
      %544 = vst.msk [vmem:[%s179 + $0x98] sm:$0xff] %vm524, %v473
      %545 = vst.msk [vmem:[%s179 + $0xa0] sm:$0xff] %vm524, %v478
      %546 = vst.msk [vmem:[%s179 + $0xa8] sm:$0xff] %vm524, %v481
      %547 = vst.msk [vmem:[%s179 + $0xb0] sm:$0xff] %vm524, %v486
      %548 = vst.msk [vmem:[%s179 + $0xb8] sm:$0xff] %vm524, %v489
      %549 = vst.msk [vmem:[%s179 + $0xc0] sm:$0xff] %vm524, %v494
      %550 = vst.msk [vmem:[%s179 + $0xc8] sm:$0xff] %vm524, %v497
      %551 = vst.msk [vmem:[%s179 + $0xd0] sm:$0xff] %vm524, %v502
      %552 = vst.msk [vmem:[%s179 + $0xd8] sm:$0xff] %vm524, %v505
      %553 = vst.msk [vmem:[%s179 + $0xe0] sm:$0xff] %vm524, %v510
      %554 = vst.msk [vmem:[%s179 + $0xe8] sm:$0xff] %vm524, %v513
      %555 = vst.msk [vmem:[%s179 + $0xf0] sm:$0xff] %vm524, %v518
      %556 = vst.msk [vmem:[%s179 + $0xf8] sm:$0xff] %vm524, %v521
      %v557 = vsel %vm524, %v398, 0.0
      %v558 = vsel %vm524, %v401, 0.0
      %v559 = vadd.f32 %v557, %v558
      %v560 = vsel %vm524, %v406, 0.0
      %v561 = vadd.f32 %v559, %v560
      %v562 = vsel %vm524, %v409, 0.0
      %v563 = vadd.f32 %v561, %v562
      %v564 = vsel %vm524, %v414, 0.0
      %v565 = vadd.f32 %v563, %v564
      %v566 = vsel %vm524, %v417, 0.0
      %v567 = vadd.f32 %v565, %v566
      %v568 = vsel %vm524, %v422, 0.0
      %v569 = vadd.f32 %v567, %v568
      %v570 = vsel %vm524, %v425, 0.0
      %v571 = vadd.f32 %v569, %v570
      %v572 = vsel %vm524, %v430, 0.0
      %v573 = vadd.f32 %v571, %v572
      %v574 = vsel %vm524, %v433, 0.0
      %v575 = vadd.f32 %v573, %v574
      %v576 = vsel %vm524, %v438, 0.0
      %v577 = vadd.f32 %v575, %v576
      %v578 = vsel %vm524, %v441, 0.0
      %v579 = vadd.f32 %v577, %v578
      %v580 = vsel %vm524, %v446, 0.0
      %v581 = vadd.f32 %v579, %v580
      %v582 = vsel %vm524, %v449, 0.0
      %v583 = vadd.f32 %v581, %v582
      %v584 = vsel %vm524, %v454, 0.0
      %v585 = vadd.f32 %v583, %v584
      %v586 = vsel %vm524, %v457, 0.0
      %v587 = vadd.f32 %v585, %v586
      %v588 = vsel %vm524, %v462, 0.0
      %v589 = vadd.f32 %v587, %v588
      %v590 = vsel %vm524, %v465, 0.0
      %v591 = vadd.f32 %v589, %v590
      %v592 = vsel %vm524, %v470, 0.0
      %v593 = vadd.f32 %v591, %v592
      %v594 = vsel %vm524, %v473, 0.0
      %v595 = vadd.f32 %v593, %v594
      %v596 = vsel %vm524, %v478, 0.0
      %v597 = vadd.f32 %v595, %v596
      %v598 = vsel %vm524, %v481, 0.0
      %v599 = vadd.f32 %v597, %v598
      %v600 = vsel %vm524, %v486, 0.0
      %v601 = vadd.f32 %v599, %v600
      %v602 = vsel %vm524, %v489, 0.0
      %v603 = vadd.f32 %v601, %v602
      %v604 = vsel %vm524, %v494, 0.0
      %v605 = vadd.f32 %v603, %v604
      %v606 = vsel %vm524, %v497, 0.0
      %v607 = vadd.f32 %v605, %v606
      %v608 = vsel %vm524, %v502, 0.0
      %v609 = vadd.f32 %v607, %v608
      %v610 = vsel %vm524, %v505, 0.0
      %v611 = vadd.f32 %v609, %v610
      %v612 = vsel %vm524, %v510, 0.0
      %v613 = vadd.f32 %v611, %v612
      %v614 = vsel %vm524, %v513, 0.0
      %v615 = vadd.f32 %v613, %v614
      %v616 = vsel %vm524, %v518, 0.0
      %v617 = vadd.f32 %v615, %v616
      %v618 = vsel %vm524, %v521, 0.0
      %v619 = vadd.f32 %v617, %v618
      %v620 = vrot.slane %v619, 4
      %v621 = vadd.f32 %v619, %v620
      %v622 = vrot.slane %v621, 2
      %v623 = vadd.f32 %v621, %v622
      %v624 = vrot.slane %v623, 1
      %v625 = vadd.f32 %v623, %v624
      %vm626 = vcmask 516096
      %627 = vst.msk [vmem:[%s184] sm:$0x1] %vm626, %v625
      %v628 = vmul.f32 %v398, %v398
      %v629 = vmul.f32 %v401, %v401
      %v630 = vmul.f32 %v406, %v406
      %v631 = vmul.f32 %v409, %v409
      %v632 = vmul.f32 %v414, %v414
      %v633 = vmul.f32 %v417, %v417
      %v634 = vmul.f32 %v422, %v422
      %v635 = vmul.f32 %v425, %v425
      %v636 = vmul.f32 %v430, %v430
      %v637 = vmul.f32 %v433, %v433
      %v638 = vmul.f32 %v438, %v438
      %v639 = vmul.f32 %v441, %v441
      %v640 = vmul.f32 %v446, %v446
      %v641 = vmul.f32 %v449, %v449
      %v642 = vmul.f32 %v454, %v454
      %v643 = vmul.f32 %v457, %v457
      %v644 = vmul.f32 %v462, %v462
      %v645 = vmul.f32 %v465, %v465
      %v646 = vmul.f32 %v470, %v470
      %v647 = vmul.f32 %v473, %v473
      %v648 = vmul.f32 %v478, %v478
      %v649 = vmul.f32 %v481, %v481
      %v650 = vmul.f32 %v486, %v486
      %v651 = vmul.f32 %v489, %v489
      %v652 = vmul.f32 %v494, %v494
      %v653 = vmul.f32 %v497, %v497
      %v654 = vmul.f32 %v502, %v502
      %v655 = vmul.f32 %v505, %v505
      %v656 = vmul.f32 %v510, %v510
      %v657 = vmul.f32 %v513, %v513
      %v658 = vmul.f32 %v518, %v518
      %v659 = vmul.f32 %v521, %v521
      %v660 = vsel %vm524, %v628, 0.0
      %v661 = vsel %vm524, %v629, 0.0
      %v662 = vadd.f32 %v660, %v661
      %v663 = vsel %vm524, %v630, 0.0
      %v664 = vadd.f32 %v662, %v663
      %v665 = vsel %vm524, %v631, 0.0
      %v666 = vadd.f32 %v664, %v665
      %v667 = vsel %vm524, %v632, 0.0
      %v668 = vadd.f32 %v666, %v667
      %v669 = vsel %vm524, %v633, 0.0
      %v670 = vadd.f32 %v668, %v669
      %v671 = vsel %vm524, %v634, 0.0
      %v672 = vadd.f32 %v670, %v671
      %v673 = vsel %vm524, %v635, 0.0
      %v674 = vadd.f32 %v672, %v673
      %v675 = vsel %vm524, %v636, 0.0
      %v676 = vadd.f32 %v674, %v675
      %v677 = vsel %vm524, %v637, 0.0
      %v678 = vadd.f32 %v676, %v677
      %v679 = vsel %vm524, %v638, 0.0
      %v680 = vadd.f32 %v678, %v679
      %v681 = vsel %vm524, %v639, 0.0
      %v682 = vadd.f32 %v680, %v681
      %v683 = vsel %vm524, %v640, 0.0
      %v684 = vadd.f32 %v682, %v683
      %v685 = vsel %vm524, %v641, 0.0
      %v686 = vadd.f32 %v684, %v685
      %v687 = vsel %vm524, %v642, 0.0
      %v688 = vadd.f32 %v686, %v687
      %v689 = vsel %vm524, %v643, 0.0
      %v690 = vadd.f32 %v688, %v689
      %v691 = vsel %vm524, %v644, 0.0
      %v692 = vadd.f32 %v690, %v691
      %v693 = vsel %vm524, %v645, 0.0
      %v694 = vadd.f32 %v692, %v693
      %v695 = vsel %vm524, %v646, 0.0
      %v696 = vadd.f32 %v694, %v695
      %v697 = vsel %vm524, %v647, 0.0
      %v698 = vadd.f32 %v696, %v697
      %v699 = vsel %vm524, %v648, 0.0
      %v700 = vadd.f32 %v698, %v699
      %v701 = vsel %vm524, %v649, 0.0
      %v702 = vadd.f32 %v700, %v701
      %v703 = vsel %vm524, %v650, 0.0
      %v704 = vadd.f32 %v702, %v703
      %v705 = vsel %vm524, %v651, 0.0
      %v706 = vadd.f32 %v704, %v705
      %v707 = vsel %vm524, %v652, 0.0
      %v708 = vadd.f32 %v706, %v707
      %v709 = vsel %vm524, %v653, 0.0
      %v710 = vadd.f32 %v708, %v709
      %v711 = vsel %vm524, %v654, 0.0
      %v712 = vadd.f32 %v710, %v711
      %v713 = vsel %vm524, %v655, 0.0
      %v714 = vadd.f32 %v712, %v713
      %v715 = vsel %vm524, %v656, 0.0
      %v716 = vadd.f32 %v714, %v715
      %v717 = vsel %vm524, %v657, 0.0
      %v718 = vadd.f32 %v716, %v717
      %v719 = vsel %vm524, %v658, 0.0
      %v720 = vadd.f32 %v718, %v719
      %v721 = vsel %vm524, %v659, 0.0
      %v722 = vadd.f32 %v720, %v721
      %v723 = vrot.slane %v722, 4
      %v724 = vadd.f32 %v722, %v723
      %v725 = vrot.slane %v724, 2
      %v726 = vadd.f32 %v724, %v725
      %v727 = vrot.slane %v726, 1
      %v728 = vadd.f32 %v726, %v727
      %729 = vst.msk [vmem:[%s184 + $0x1] sm:$0x1] %vm626, %v728
      %s730 = smul.u32 32, %s15
      %p731 = scmp.lt.s32.totalorder %s730, 63
      %s732 = scalar_select %p731, %s730, 63
      %s733 = smul.addr %s732, 8
      %s734 = scalar_lea.vmem %s2, %s733
      %p735 = scmp.lt.s32.totalorder %s15, 1
      %s736 = scalar_select %p735, %s15, 1
      %s737 = smul.addr %s736, 2
      %s738 = scalar_lea.vmem %s3, %s737
      // Predicated region
      $region29: #{transition_up_forward.2} parent=27 // pred_check
        %p739 = pneg %p80
      $region30: #{transition_up_forward.2} parent=27 // pred_check_branch
        %741 = sbr.rel (%p739) target = $region32
      $region31: #{transition_up_forward.2} parent=27 // pred_region
        %s742 = smul.u32 32, %s15
      $region32: #{transition_up_forward.2} parent=27 // pred_fallthru
        _
      // Predicated region
      $region33: #{transition_up_forward.2} parent=27 // pred_check
        %p743 = pneg %p106
      $region34: #{transition_up_forward.2} parent=27 // pred_check_branch
        %745 = sbr.rel (%p743) target = $region36
      $region35: #{transition_up_forward.2} parent=27 // pred_region
        _
      $region36: #{transition_up_forward.2} parent=27 // pred_fallthru
        _
    $region28: #{transition_up_forward.2} parent=5 // pred_fallthru
      _
    %p746 = scmp.le.s32.totalorder 2, %s10
    // Predicated region
    $region37: #{transition_up_forward.2} parent=5 // pred_check
      %p747 = pneg %p746
    $region38: #{transition_up_forward.2} parent=5 // pred_check_branch
      %749 = sbr.rel (%p747) target = $region40
    $region39: #{transition_up_forward.2} parent=5 // pred_region
      %s750 = ssub.s32 %s10, 2
      // Predicated region
      $region41: #{transition_up_forward.2} parent=39 // pred_check
        %p751 = pneg %p86
      $region42: #{transition_up_forward.2} parent=39 // pred_check_branch
        %753 = sbr.rel (%p751) target = $region44
      $region43: #{transition_up_forward.2} parent=39 // pred_region
        %s754 = smul.u32 32, %s16
        %p755 = scmp.lt.s32.totalorder %s754, 63
        %s756 = scalar_select %p755, %s754, 63
        %s757 = smul.addr %s756, 8
        %s758 = scalar_lea.vmem %s2, %s757
      $region44: #{transition_up_forward.2} parent=39 // pred_fallthru
        _
      // Predicated region
      $region45: #{transition_up_forward.2} parent=39 // pred_check
        %p759 = pneg %p112
      $region46: #{transition_up_forward.2} parent=39 // pred_check_branch
        %761 = sbr.rel (%p759) target = $region48
      $region47: #{transition_up_forward.2} parent=39 // pred_region
        %p762 = scmp.lt.s32.totalorder %s16, 1
        %s763 = scalar_select %p762, %s16, 1
        %s764 = smul.addr %s763, 2
        %s765 = scalar_lea.vmem %s3, %s764
      $region48: #{transition_up_forward.2} parent=39 // pred_fallthru
        _
    $region40: #{transition_up_forward.2} parent=5 // pred_fallthru
      _
  $region6: #{transition_up_forward.2} parent=0 // loop_footer
    %s14 = sadd.s32 1, %s10
  $region7: #{transition_up_forward.2} parent=0 // loop_footer_branch
    %9 = sbr.rel target = $region3
  $region8: #{transition_up_forward.2} parent=0 // loop_exit
    _

</llo_original>
